<compile_context>
chip_gen: v7x
topology: tpu7x:2x2x1
jax: 0.10.0
libtpu: 0.0.40
codegen_flags: <defaults>
</compile_context>

<pallas_src>
import functools
import math

import jax
import jax.numpy as jnp
from jax.experimental import pallas as pl
from jax.experimental.pallas import tpu as pltpu

_HALF_LOG_2PI = 0.5 * math.log(2.0 * math.pi)


def _softplus(z):
    # Matches torch.nn.functional.softplus(beta=1, threshold=20); log1p for precision.
    return jnp.where(z > 20.0, z, jnp.log1p(jnp.exp(jnp.minimum(z, 20.0))))


def _policy_kernel(alpha_ref,                     # SMEM (1,)  PReLU weight (num_parameters=1)
                   x_ref, eps_ref,                # [TB, S], [TB, A]
                   w1_ref, b1_ref,                # [S, H1], [1, H1]
                   w2_ref, b2_ref,                # [H1, H2], [1, H2]
                   wmu_ref, bmu_ref,              # [H2, A], [1, A]
                   wstd_ref, bstd_ref,            # [H2, A], [1, A]
                   action_ref, logprob_ref,       # [TB, A], [TB, A]
                   *, action_bound):
    alpha = alpha_ref[0]

    def prelu(h):
        return jnp.where(h >= 0.0, h, alpha * h)

    x = x_ref[...]
    h = prelu(jnp.dot(x, w1_ref[...], preferred_element_type=jnp.float32) + b1_ref[...])
    h = prelu(jnp.dot(h, w2_ref[...], preferred_element_type=jnp.float32) + b2_ref[...])

    mu = jnp.dot(h, wmu_ref[...], preferred_element_type=jnp.float32) + bmu_ref[...]
    std = _softplus(jnp.dot(h, wstd_ref[...], preferred_element_type=jnp.float32)
                    + bstd_ref[...]) + 1e-6

    eps = eps_ref[...]
    normal_sample = mu + std * eps                      # dist.rsample()

    # Normal(mu, std).log_prob(mu + std*eps)
    log_prob = -0.5 * eps * eps - jnp.log(std) - _HALF_LOG_2PI

    action = jnp.tanh(normal_sample)
    # NOTE: the original PyTorch code applies tanh to `action` AGAIN
    # (log(1 - tanh(tanh(z))^2 + 1e-7)); reproduced exactly, via log1p.
    t2 = jnp.tanh(action)
    log_prob = log_prob - jnp.log1p(1e-7 - t2 * t2)

    action_ref[...] = action * action_bound
    logprob_ref[...] = log_prob


def _round_up(v, m):
    return -(-v // m) * m


def policy_net_continuous(x, eps, params, action_bound, *, block_batch=4096):
    """x: [B, S] f32, eps: [B, A] f32 -> (action, log_prob), both [B, A]."""
    alpha, w1, b1, w2, b2, wmu, bmu, wstd, bstd = params
    B, S = x.shape
    H1 = w1.shape[1]
    H2 = w2.shape[1]
    A = wmu.shape[1]
    assert block_batch % 8 == 0

    # ---- batch tiling ------------------------------------------------------
    b8 = _round_up(B, 8)
    tb = min(block_batch, b8)
    if tb == b8 and b8 >= 16:
        # Keep >= 2 grid steps so both v7x TensorCores get work
        # (near-zero cost on single-TC v5e/v6e: one extra ~0.35us step).
        tb = _round_up(-(-b8 // 2), 8)
    n_tiles = -(-b8 // tb)
    tb = _round_up(-(-b8 // n_tiles), 8)       # rebalance -> minimal batch padding
    b_pad = tb * n_tiles
    grid = (n_tiles,)

    x = x.astype(jnp.float32)
    eps = eps.astype(jnp.float32)
    if b_pad != B:                              # pad batch rows only (no lane padding)
        x = jnp.pad(x, ((0, b_pad - B), (0, 0)))
        eps = jnp.pad(eps, ((0, b_pad - B), (0, 0)))

    kernel = functools.partial(_policy_kernel, action_bound=float(action_bound))

    def row_spec(cols):
        return pl.BlockSpec((tb, cols), lambda i: (i, 0))

    def resident(shape):
        # Whole (tiny) array, same block every grid step -> stays VMEM resident.
        return pl.BlockSpec(shape, lambda i: (0, 0))

    # Advisory cost estimate (updated for the slim I/O shapes).
    flops = int(2 * b_pad * (S * H1 + H1 * H2 + 2 * H2 * A) + 30 * b_pad * A)
    transcendentals = int(6 * b_pad * A)
    bytes_accessed = int(4 * (b_pad * (S + 3 * A)
                              + S * H1 + H1 + H1 * H2 + H2 + 2 * (H2 * A + A) + 1))

    action, log_prob = pl.pallas_call(
        kernel,
        out_shape=(jax.ShapeDtypeStruct((b_pad, A), jnp.float32),
                   jax.ShapeDtypeStruct((b_pad, A), jnp.float32)),
        grid_spec=pltpu.PrefetchScalarGridSpec(
            num_scalar_prefetch=0,
            grid=grid,
            in_specs=[
                pl.BlockSpec(memory_space=pltpu.MemorySpace.SMEM),  # alpha
                row_spec(S),                     # x
                row_spec(A),                     # eps
                resident((S, H1)),               # w1
                resident((1, H1)),               # b1
                resident((H1, H2)),              # w2
                resident((1, H2)),               # b2
                resident((H2, A)),               # w_mu
                resident((1, A)),                # b_mu
                resident((H2, A)),               # w_std
                resident((1, A)),                # b_std
            ],
            out_specs=(row_spec(A), row_spec(A)),
        ),
        compiler_params=pltpu.CompilerParams(
            dimension_semantics=("parallel",)),
        cost_estimate=pl.CostEstimate(
            flops=flops,
            transcendentals=transcendentals,
            bytes_accessed=bytes_accessed),
    )(alpha, x, eps, w1, b1, w2, b2, wmu, bmu, wstd, bstd)

    return action[:B], log_prob[:B]


def _init_params(key, state_dim, hidden_dim, action_dim):
    """Deterministic synthetic init mirroring the PyTorch module's shapes.

    Hidden Linear layers: PyTorch default uniform(-1/sqrt(fan_in), 1/sqrt(fan_in)).
    fc_mu / fc_std weights: kaiming_uniform_(nonlinearity='relu') -> U(-sqrt(6/fan_in), ...).
    Weights are returned pre-transposed as [in, out].
    """
    keys = jax.random.split(key, 8)
    sizes = [state_dim] + list(hidden_dim)

    ws, bs = [], []
    for i, (fi, fo) in enumerate(zip(sizes[:-1], sizes[1:])):
        bound = 1.0 / math.sqrt(fi)
        ws.append(jax.random.uniform(keys[2 * i], (fi, fo), jnp.float32, -bound, bound))
        bs.append(jax.random.uniform(keys[2 * i + 1], (1, fo), jnp.float32, -bound, bound))

    fin = sizes[-1]
    kbound = math.sqrt(6.0 / fin)
    bbound = 1.0 / math.sqrt(fin)
    wmu = jax.random.uniform(keys[4], (fin, action_dim), jnp.float32, -kbound, kbound)
    bmu = jax.random.uniform(keys[5], (1, action_dim), jnp.float32, -bbound, bbound)
    wstd = jax.random.uniform(keys[6], (fin, action_dim), jnp.float32, -kbound, kbound)
    bstd = jax.random.uniform(keys[7], (1, action_dim), jnp.float32, -bbound, bbound)

    alpha = jnp.array([0.25], dtype=jnp.float32)  # PReLU default init
    return (alpha, ws[0], bs[0], ws[1], bs[1], wmu, bmu, wstd, bstd)


def _reference(x, eps, params, action_bound):
    """Pure-JAX reference for a sanity check."""
    alpha, w1, b1, w2, b2, wmu, bmu, wstd, bstd = params
    prelu = lambda h: jnp.where(h >= 0, h, alpha[0] * h)
    h = prelu(x @ w1 + b1)
    h = prelu(h @ w2 + b2)
    mu = h @ wmu + bmu
    std = _softplus(h @ wstd + bstd) + 1e-6
    z = mu + std * eps
    lp = -0.5 * eps * eps - jnp.log(std) - _HALF_LOG_2PI
    a = jnp.tanh(z)
    t2 = jnp.tanh(a)
    lp = lp - jnp.log(1.0 - t2 * t2 + 1e-7)
    return a * action_bound, lp


if __name__ == "__main__":
    # dof = 3  =>  state_dim = 6, action_dim = 3, action_bound = 1.0
    state_dim, action_dim, action_bound = 6, 3, 1.0
    hidden_dim = (32, 32)
    batch = 8

    root = jax.random.PRNGKey(0)
    k_params, k_x, k_eps = jax.random.split(root, 3)

    params = _init_params(k_params, state_dim, hidden_dim, action_dim)
    x = jax.random.normal(k_x, (batch, state_dim), dtype=jnp.float32)
    eps = jax.random.normal(k_eps, (batch, action_dim), dtype=jnp.float32)

    action, log_prob = policy_net_continuous(x, eps, params, action_bound)
    jax.block_until_ready((action, log_prob))

    ref_action, ref_log_prob = _reference(x, eps, params, action_bound)
    assert action.shape == (batch, action_dim) and log_prob.shape == (batch, action_dim)
    assert jnp.allclose(action, ref_action, atol=1e-4, rtol=1e-4)
    assert jnp.allclose(log_prob, ref_log_prob, atol=1e-4, rtol=1e-4)

    # Also exercise a ragged batch that splits into a >1-step grid.
    batch2 = 20
    x2 = jax.random.normal(jax.random.PRNGKey(1), (batch2, state_dim), dtype=jnp.float32)
    eps2 = jax.random.normal(jax.random.PRNGKey(2), (batch2, action_dim), dtype=jnp.float32)
    a2, lp2 = policy_net_continuous(x2, eps2, params, action_bound)
    jax.block_until_ready((a2, lp2))
    ra2, rlp2 = _reference(x2, eps2, params, action_bound)
    assert jnp.allclose(a2, ra2, atol=1e-4, rtol=1e-4)
    assert jnp.allclose(lp2, rlp2, atol=1e-4, rtol=1e-4)

    print("KERNEL_OK")
</pallas_src>

<mosaic_0001>
module attributes {stable_mosaic.version = 11 : i64} {
  func.func @_policy_kernel(%arg0: i32, %arg1: memref<1xf32, #tpu.memory_space<smem>>, %arg2: memref<8x6xf32, #tpu.memory_space<vmem>>, %arg3: memref<8x3xf32, #tpu.memory_space<vmem>>, %arg4: memref<6x32xf32, #tpu.memory_space<vmem>>, %arg5: memref<1x32xf32, #tpu.memory_space<vmem>>, %arg6: memref<32x32xf32, #tpu.memory_space<vmem>>, %arg7: memref<1x32xf32, #tpu.memory_space<vmem>>, %arg8: memref<32x3xf32, #tpu.memory_space<vmem>>, %arg9: memref<1x3xf32, #tpu.memory_space<vmem>>, %arg10: memref<32x3xf32, #tpu.memory_space<vmem>>, %arg11: memref<1x3xf32, #tpu.memory_space<vmem>>, %arg12: memref<8x3xf32, #tpu.memory_space<vmem>>, %arg13: memref<8x3xf32, #tpu.memory_space<vmem>>) attributes {dimension_semantics = [#tpu.dimension_semantics<parallel>], iteration_bounds = array<i64: 1>, scalar_prefetch = 0 : i64, scratch_operands = 0 : i64, tpu.core_type = #tpu.core_type<tc>, window_params = [{transform_indices = @transform_0, window_bounds = array<i64: 1>}, {transform_indices = @transform_1, window_bounds = array<i64: 8, 6>}, {transform_indices = @transform_2, window_bounds = array<i64: 8, 3>}, {pipeline_mode = #tpu.pipeline_mode<synchronous>, transform_indices = @transform_3, window_bounds = array<i64: 6, 32>}, {pipeline_mode = #tpu.pipeline_mode<synchronous>, transform_indices = @transform_4, window_bounds = array<i64: 1, 32>}, {pipeline_mode = #tpu.pipeline_mode<synchronous>, transform_indices = @transform_5, window_bounds = array<i64: 32, 32>}, {pipeline_mode = #tpu.pipeline_mode<synchronous>, transform_indices = @transform_6, window_bounds = array<i64: 1, 32>}, {pipeline_mode = #tpu.pipeline_mode<synchronous>, transform_indices = @transform_7, window_bounds = array<i64: 32, 3>}, {pipeline_mode = #tpu.pipeline_mode<synchronous>, transform_indices = @transform_8, window_bounds = array<i64: 1, 3>}, {pipeline_mode = #tpu.pipeline_mode<synchronous>, transform_indices = @transform_9, window_bounds = array<i64: 32, 3>}, {pipeline_mode = #tpu.pipeline_mode<synchronous>, transform_indices = @transform_10, window_bounds = array<i64: 1, 3>}, {transform_indices = @transform_11, window_bounds = array<i64: 8, 3>}, {transform_indices = @transform_12, window_bounds = array<i64: 8, 3>}]} {
    %c0 = arith.constant 0 : index
    %0 = memref.load %arg1[%c0] : memref<1xf32, #tpu.memory_space<smem>>
    %c0_0 = arith.constant 0 : index
    %c0_1 = arith.constant 0 : index
    %1 = vector.load %arg2[%c0_0, %c0_1] : memref<8x6xf32, #tpu.memory_space<vmem>>, vector<8x6xf32>
    %c0_2 = arith.constant 0 : index
    %c0_3 = arith.constant 0 : index
    %2 = vector.load %arg4[%c0_2, %c0_3] : memref<6x32xf32, #tpu.memory_space<vmem>>, vector<6x32xf32>
    %cst = arith.constant dense<0.000000e+00> : vector<8x32xf32>
    %3 = tpu.matmul %1, %2, %cst {dimension_numbers = #tpu.dot_dimension_numbers<[1], [0], [0], [1], [0, 0, 1, 1], [], []>} : vector<8x6xf32>, vector<6x32xf32>, vector<8x32xf32> -> vector<8x32xf32>
    %c0_4 = arith.constant 0 : index
    %c0_5 = arith.constant 0 : index
    %4 = vector.load %arg5[%c0_4, %c0_5] : memref<1x32xf32, #tpu.memory_space<vmem>>, vector<1x32xf32>
    %5 = vector.broadcast %4 : vector<1x32xf32> to vector<8x32xf32>
    %6 = arith.addf %3, %5 : vector<8x32xf32>
    %cst_6 = arith.constant 0.000000e+00 : f32
    %7 = vector.broadcast %cst_6 : f32 to vector<8x32xf32>
    %8 = arith.cmpf oge, %6, %7 : vector<8x32xf32>
    %9 = vector.broadcast %0 : f32 to vector<8x32xf32>
    %10 = arith.mulf %9, %6 : vector<8x32xf32>
    %11 = arith.select %8, %6, %10 : vector<8x32xi1>, vector<8x32xf32>
    %c0_7 = arith.constant 0 : index
    %c0_8 = arith.constant 0 : index
    %12 = vector.load %arg6[%c0_7, %c0_8] : memref<32x32xf32, #tpu.memory_space<vmem>>, vector<32x32xf32>
    %cst_9 = arith.constant dense<0.000000e+00> : vector<8x32xf32>
    %13 = tpu.matmul %11, %12, %cst_9 {dimension_numbers = #tpu.dot_dimension_numbers<[1], [0], [0], [1], [0, 0, 1, 1], [], []>} : vector<8x32xf32>, vector<32x32xf32>, vector<8x32xf32> -> vector<8x32xf32>
    %c0_10 = arith.constant 0 : index
    %c0_11 = arith.constant 0 : index
    %14 = vector.load %arg7[%c0_10, %c0_11] : memref<1x32xf32, #tpu.memory_space<vmem>>, vector<1x32xf32>
    %15 = vector.broadcast %14 : vector<1x32xf32> to vector<8x32xf32>
    %16 = arith.addf %13, %15 : vector<8x32xf32>
    %cst_12 = arith.constant 0.000000e+00 : f32
    %17 = vector.broadcast %cst_12 : f32 to vector<8x32xf32>
    %18 = arith.cmpf oge, %16, %17 : vector<8x32xf32>
    %19 = vector.broadcast %0 : f32 to vector<8x32xf32>
    %20 = arith.mulf %19, %16 : vector<8x32xf32>
    %21 = arith.select %18, %16, %20 : vector<8x32xi1>, vector<8x32xf32>
    %c0_13 = arith.constant 0 : index
    %c0_14 = arith.constant 0 : index
    %22 = vector.load %arg8[%c0_13, %c0_14] : memref<32x3xf32, #tpu.memory_space<vmem>>, vector<32x3xf32>
    %cst_15 = arith.constant dense<0.000000e+00> : vector<8x3xf32>
    %23 = tpu.matmul %21, %22, %cst_15 {dimension_numbers = #tpu.dot_dimension_numbers<[1], [0], [0], [1], [0, 0, 1, 1], [], []>} : vector<8x32xf32>, vector<32x3xf32>, vector<8x3xf32> -> vector<8x3xf32>
    %c0_16 = arith.constant 0 : index
    %c0_17 = arith.constant 0 : index
    %24 = vector.load %arg9[%c0_16, %c0_17] : memref<1x3xf32, #tpu.memory_space<vmem>>, vector<1x3xf32>
    %25 = vector.broadcast %24 : vector<1x3xf32> to vector<8x3xf32>
    %26 = arith.addf %23, %25 : vector<8x3xf32>
    %c0_18 = arith.constant 0 : index
    %c0_19 = arith.constant 0 : index
    %27 = vector.load %arg10[%c0_18, %c0_19] : memref<32x3xf32, #tpu.memory_space<vmem>>, vector<32x3xf32>
    %cst_20 = arith.constant dense<0.000000e+00> : vector<8x3xf32>
    %28 = tpu.matmul %21, %27, %cst_20 {dimension_numbers = #tpu.dot_dimension_numbers<[1], [0], [0], [1], [0, 0, 1, 1], [], []>} : vector<8x32xf32>, vector<32x3xf32>, vector<8x3xf32> -> vector<8x3xf32>
    %c0_21 = arith.constant 0 : index
    %c0_22 = arith.constant 0 : index
    %29 = vector.load %arg11[%c0_21, %c0_22] : memref<1x3xf32, #tpu.memory_space<vmem>>, vector<1x3xf32>
    %30 = vector.broadcast %29 : vector<1x3xf32> to vector<8x3xf32>
    %31 = arith.addf %28, %30 : vector<8x3xf32>
    %cst_23 = arith.constant 2.000000e+01 : f32
    %32 = vector.broadcast %cst_23 : f32 to vector<8x3xf32>
    %33 = arith.cmpf ogt, %31, %32 : vector<8x3xf32>
    %cst_24 = arith.constant 2.000000e+01 : f32
    %34 = vector.broadcast %cst_24 : f32 to vector<8x3xf32>
    %35 = arith.minimumf %31, %34 : vector<8x3xf32>
    %36 = math.exp %35 : vector<8x3xf32>
    %37 = math.log1p %36 : vector<8x3xf32>
    %38 = arith.select %33, %31, %37 : vector<8x3xi1>, vector<8x3xf32>
    %cst_25 = arith.constant 9.99999997E-7 : f32
    %39 = vector.broadcast %cst_25 : f32 to vector<8x3xf32>
    %40 = arith.addf %38, %39 : vector<8x3xf32>
    %c0_26 = arith.constant 0 : index
    %c0_27 = arith.constant 0 : index
    %41 = vector.load %arg3[%c0_26, %c0_27] : memref<8x3xf32, #tpu.memory_space<vmem>>, vector<8x3xf32>
    %42 = arith.mulf %40, %41 : vector<8x3xf32>
    %43 = arith.addf %26, %42 : vector<8x3xf32>
    %cst_28 = arith.constant -5.000000e-01 : f32
    %44 = vector.broadcast %cst_28 : f32 to vector<8x3xf32>
    %45 = arith.mulf %44, %41 : vector<8x3xf32>
    %46 = arith.mulf %45, %41 : vector<8x3xf32>
    %47 = math.log %40 : vector<8x3xf32>
    %48 = arith.subf %46, %47 : vector<8x3xf32>
    %cst_29 = arith.constant 0.918938517 : f32
    %49 = vector.broadcast %cst_29 : f32 to vector<8x3xf32>
    %50 = arith.subf %48, %49 : vector<8x3xf32>
    %51 = math.tanh %43 : vector<8x3xf32>
    %52 = math.tanh %51 : vector<8x3xf32>
    %53 = arith.mulf %52, %52 : vector<8x3xf32>
    %cst_30 = arith.constant 1.000000e-07 : f32
    %54 = vector.broadcast %cst_30 : f32 to vector<8x3xf32>
    %55 = arith.subf %54, %53 : vector<8x3xf32>
    %56 = math.log1p %55 : vector<8x3xf32>
    %57 = arith.subf %50, %56 : vector<8x3xf32>
    %cst_31 = arith.constant 1.000000e+00 : f32
    %58 = vector.broadcast %cst_31 : f32 to vector<8x3xf32>
    %59 = arith.mulf %51, %58 : vector<8x3xf32>
    %c0_32 = arith.constant 0 : index
    %c0_33 = arith.constant 0 : index
    %60 = vector.load %arg12[%c0_32, %c0_33] : memref<8x3xf32, #tpu.memory_space<vmem>>, vector<8x3xf32>
    tpu.vector_store %arg12[%c0_32, %c0_33], %59 {strides = array<i32>} : memref<8x3xf32, #tpu.memory_space<vmem>>, vector<8x3xf32>,
    %c0_34 = arith.constant 0 : index
    %c0_35 = arith.constant 0 : index
    %61 = vector.load %arg13[%c0_34, %c0_35] : memref<8x3xf32, #tpu.memory_space<vmem>>, vector<8x3xf32>
    tpu.vector_store %arg13[%c0_34, %c0_35], %57 {strides = array<i32>} : memref<8x3xf32, #tpu.memory_space<vmem>>, vector<8x3xf32>,
    return
  }
  func.func @transform_0(%arg0: i32) -> i32 {
    %c0_i32 = arith.constant 0 : i32
    %c0_i32_0 = arith.constant 0 : i32
    return %c0_i32 : i32
  }
  func.func @transform_1(%arg0: i32) -> (i32, i32) {
    %c0_i32 = arith.constant 0 : i32
    %c0_i32_0 = arith.constant 0 : i32
    return %arg0, %c0_i32 : i32, i32
  }
  func.func @transform_2(%arg0: i32) -> (i32, i32) {
    %c0_i32 = arith.constant 0 : i32
    %c0_i32_0 = arith.constant 0 : i32
    return %arg0, %c0_i32 : i32, i32
  }
  func.func @transform_3(%arg0: i32) -> (i32, i32) {
    %c0_i32 = arith.constant 0 : i32
    %c0_i32_0 = arith.constant 0 : i32
    %c0_i32_1 = arith.constant 0 : i32
    return %c0_i32, %c0_i32_0 : i32, i32
  }
  func.func @transform_4(%arg0: i32) -> (i32, i32) {
    %c0_i32 = arith.constant 0 : i32
    %c0_i32_0 = arith.constant 0 : i32
    %c0_i32_1 = arith.constant 0 : i32
    return %c0_i32, %c0_i32_0 : i32, i32
  }
  func.func @transform_5(%arg0: i32) -> (i32, i32) {
    %c0_i32 = arith.constant 0 : i32
    %c0_i32_0 = arith.constant 0 : i32
    %c0_i32_1 = arith.constant 0 : i32
    return %c0_i32, %c0_i32_0 : i32, i32
  }
  func.func @transform_6(%arg0: i32) -> (i32, i32) {
    %c0_i32 = arith.constant 0 : i32
    %c0_i32_0 = arith.constant 0 : i32
    %c0_i32_1 = arith.constant 0 : i32
    return %c0_i32, %c0_i32_0 : i32, i32
  }
  func.func @transform_7(%arg0: i32) -> (i32, i32) {
    %c0_i32 = arith.constant 0 : i32
    %c0_i32_0 = arith.constant 0 : i32
    %c0_i32_1 = arith.constant 0 : i32
    return %c0_i32, %c0_i32_0 : i32, i32
  }
  func.func @transform_8(%arg0: i32) -> (i32, i32) {
    %c0_i32 = arith.constant 0 : i32
    %c0_i32_0 = arith.constant 0 : i32
    %c0_i32_1 = arith.constant 0 : i32
    return %c0_i32, %c0_i32_0 : i32, i32
  }
  func.func @transform_9(%arg0: i32) -> (i32, i32) {
    %c0_i32 = arith.constant 0 : i32
    %c0_i32_0 = arith.constant 0 : i32
    %c0_i32_1 = arith.constant 0 : i32
    return %c0_i32, %c0_i32_0 : i32, i32
  }
  func.func @transform_10(%arg0: i32) -> (i32, i32) {
    %c0_i32 = arith.constant 0 : i32
    %c0_i32_0 = arith.constant 0 : i32
    %c0_i32_1 = arith.constant 0 : i32
    return %c0_i32, %c0_i32_0 : i32, i32
  }
  func.func @transform_11(%arg0: i32) -> (i32, i32) {
    %c0_i32 = arith.constant 0 : i32
    %c0_i32_0 = arith.constant 0 : i32
    return %arg0, %c0_i32 : i32, i32
  }
  func.func @transform_12(%arg0: i32) -> (i32, i32) {
    %c0_i32 = arith.constant 0 : i32
    %c0_i32_0 = arith.constant 0 : i32
    return %arg0, %c0_i32 : i32, i32
  }
}

</mosaic_0001>

<llo_original>
// kernel: tpu_custom_call.1
$region0: #{tpu_custom_call.1}
  #allocation0 [shape = 'u32[]', space=smem, size = 0x4, offset = 0x4, fixed_abs, tag = 'smem constant byte address 0x4 - core index']
  #allocation1 [shape = 'u32[144,128]{1,0:T(1,128)}', space=vmem, size = 0x12000, scoped, tag = 'internal scratch']
  #allocation2 [shape = 'f32[1]{0:T(128)S(6)}', space=smem, size = 0x200, scoped, tag = 'scoped memory for tpu_custom_call.1']
  %s0 = inlined_call_operand.<no memory space> [shape: f32[1], index: 0, kind: input, shape index: {}]
  %s1 = inlined_call_operand.vmem [shape: f32[8,6], index: 1, kind: input, shape index: {}]
  %s2 = inlined_call_operand.vmem [shape: f32[8,3], index: 2, kind: input, shape index: {}]
  %s3 = inlined_call_operand.vmem [shape: f32[6,32], index: 3, kind: input, shape index: {}]
  %s4 = inlined_call_operand.vmem [shape: f32[1,32], index: 4, kind: input, shape index: {}]
  %s5 = inlined_call_operand.vmem [shape: f32[32,32], index: 5, kind: input, shape index: {}]
  %s6 = inlined_call_operand.vmem [shape: f32[1,32], index: 6, kind: input, shape index: {}]
  %s7 = inlined_call_operand.vmem [shape: f32[32,3], index: 7, kind: input, shape index: {}]
  %s8 = inlined_call_operand.vmem [shape: f32[1,3], index: 8, kind: input, shape index: {}]
  %s9 = inlined_call_operand.vmem [shape: f32[32,3], index: 9, kind: input, shape index: {}]
  %s10 = inlined_call_operand.vmem [shape: f32[1,3], index: 10, kind: input, shape index: {}]
  %s11 = inlined_call_operand.vmem [shape: f32[8,3], index: 11, kind: output, shape index: {0}]
  %s12 = inlined_call_operand.vmem [shape: f32[8,3], index: 12, kind: output, shape index: {1}]
  %13 = xla_tuple %s11, %s12
  %s14 = sld [smem:[#allocation0]]
  $region62: #{tpu_custom_call.1} parent=0
    _
  %s16 = ssub.s32 1, %s14
  %s17 = scalar_select 0, %s16, %s14
  %18 = sst [smem:[#allocation2]] %s0
  // Predicated region
  $region2: #{tpu_custom_call.1} parent=0 // pred_check
    _
  $region3: #{tpu_custom_call.1} parent=0 // pred_check_branch
    %20 = sbr.rel (0) target = $region5
  $region4: #{tpu_custom_call.1} parent=0 // pred_region
    _
  $region5: #{tpu_custom_call.1} parent=0 // pred_fallthru
    _
  // Predicated region
  $region6: #{tpu_custom_call.1} parent=0 // pred_check
    _
  $region7: #{tpu_custom_call.1} parent=0 // pred_check_branch
    %22 = sbr.rel (0) target = $region9
  $region8: #{tpu_custom_call.1} parent=0 // pred_region
    _
  $region9: #{tpu_custom_call.1} parent=0 // pred_fallthru
    _
  // Predicated region
  $region10: #{tpu_custom_call.1} parent=0 // pred_check
    _
  $region11: #{tpu_custom_call.1} parent=0 // pred_check_branch
    %24 = sbr.rel (0) target = $region13
  $region12: #{tpu_custom_call.1} parent=0 // pred_region
    _
  $region13: #{tpu_custom_call.1} parent=0 // pred_fallthru
    _
  // Predicated region
  $region14: #{tpu_custom_call.1} parent=0 // pred_check
    _
  $region15: #{tpu_custom_call.1} parent=0 // pred_check_branch
    %26 = sbr.rel (0) target = $region17
  $region16: #{tpu_custom_call.1} parent=0 // pred_region
    _
  $region17: #{tpu_custom_call.1} parent=0 // pred_fallthru
    _
  // Predicated region
  $region18: #{tpu_custom_call.1} parent=0 // pred_check
    _
  $region19: #{tpu_custom_call.1} parent=0 // pred_check_branch
    %28 = sbr.rel (0) target = $region21
  $region20: #{tpu_custom_call.1} parent=0 // pred_region
    _
  $region21: #{tpu_custom_call.1} parent=0 // pred_fallthru
    _
  // Predicated region
  $region22: #{tpu_custom_call.1} parent=0 // pred_check
    _
  $region23: #{tpu_custom_call.1} parent=0 // pred_check_branch
    %30 = sbr.rel (0) target = $region25
  $region24: #{tpu_custom_call.1} parent=0 // pred_region
    _
  $region25: #{tpu_custom_call.1} parent=0 // pred_fallthru
    _
  // Predicated region
  $region26: #{tpu_custom_call.1} parent=0 // pred_check
    _
  $region27: #{tpu_custom_call.1} parent=0 // pred_check_branch
    %32 = sbr.rel (0) target = $region29
  $region28: #{tpu_custom_call.1} parent=0 // pred_region
    _
  $region29: #{tpu_custom_call.1} parent=0 // pred_fallthru
    _
  // Predicated region
  $region30: #{tpu_custom_call.1} parent=0 // pred_check
    _
  $region31: #{tpu_custom_call.1} parent=0 // pred_check_branch
    %34 = sbr.rel (0) target = $region33
  $region32: #{tpu_custom_call.1} parent=0 // pred_region
    _
  $region33: #{tpu_custom_call.1} parent=0 // pred_fallthru
    _
  // Predicated region
  $region34: #{tpu_custom_call.1} parent=0 // pred_check
    _
  $region35: #{tpu_custom_call.1} parent=0 // pred_check_branch
    %36 = sbr.rel (0) target = $region37
  $region36: #{tpu_custom_call.1} parent=0 // pred_region
    _
  $region37: #{tpu_custom_call.1} parent=0 // pred_fallthru
    _
  // Predicated region
  $region38: #{tpu_custom_call.1} parent=0 // pred_check
    _
  $region39: #{tpu_custom_call.1} parent=0 // pred_check_branch
    %38 = sbr.rel (0) target = $region41
  $region40: #{tpu_custom_call.1} parent=0 // pred_region
    _
  $region41: #{tpu_custom_call.1} parent=0 // pred_fallthru
    _
  // Predicated region
  $region42: #{tpu_custom_call.1} parent=0 // pred_check
    _
  $region43: #{tpu_custom_call.1} parent=0 // pred_check_branch
    %40 = sbr.rel (0) target = $region45
  $region44: #{tpu_custom_call.1} parent=0 // pred_region
    _
  $region45: #{tpu_custom_call.1} parent=0 // pred_fallthru
    _
  %s41 = sld [smem:[#allocation2]]
  %v42 = vld [vmem:[%s1] sm:$0xff]
  %v43 = vld [vmem:[%s3] sm:$0x3f]
  %v44 = vld [vmem:[%s4] sm:$0x1]
  %v46 = vlaneseq
  %v47 = vshrl.u32 %v46, 7
  %v48 = vsub.s32 0, %v47
  %v49 = vrot.slane %v44, %v48
  %vm51 = vcmask 48128
  %v53 = vsel %vm51, %v42, 0
  %vm55 = vcmask 1045504
  %v57 = vsel %vm55, %v43, 0
  %59 = vmatprep.subr.mxu0 0.0
  %60 = vmatpush1.msra.mxu0 %v57
  %61 = vmatprep.subr.mxu0 0.0
  %62 = vmatpush1.msra.mxu0 0.0
  %63 = vmatprep.subr.mxu0 0.0
  %64 = vmatpush1.msra.mxu0 0.0
  %65 = vmatprep.subr.mxu0 0.0
  %66 = vmatpush1.msra.mxu0 0.0
  %67 = vmatprep.subr.mxu0 0.0
  %68 = vmatpush1.msra.mxu0 0.0
  %69 = vmatprep.subr.mxu0 0.0
  %70 = vmatpush1.msra.mxu0 0.0
  %71 = vmatprep.subr.mxu0 0.0
  %72 = vmatpush1.msra.mxu0 0.0
  %73 = vmatprep.subr.mxu0 0.0
  %74 = vmatpush1.msra.mxu0 0.0
  %75 = vmatprep.subr.mxu0 0.0
  %76 = vmatpush1.msra.mxu0 0.0
  %77 = vmatprep.subr.mxu0 0.0
  %78 = vmatpush1.msra.mxu0 0.0
  %79 = vmatprep.subr.mxu0 0.0
  %80 = vmatpush1.msra.mxu0 0.0
  %81 = vmatprep.subr.mxu0 0.0
  %82 = vmatpush1.msra.mxu0 0.0
  %83 = vmatprep.subr.mxu0 0.0
  %84 = vmatpush1.msra.mxu0 0.0
  %85 = vmatprep.subr.mxu0 0.0
  %86 = vmatpush1.msra.mxu0 0.0
  %87 = vmatprep.subr.mxu0 0.0
  %88 = vmatpush1.msra.mxu0 0.0
  %89 = vmatprep.subr.mxu0 0.0
  %90 = vmatpush1.msra.mxu0 0.0
  %91 = vmatprep.subr.mxu0 0.0
  %92 = vmatpush1.msra.mxu0 0.0
  %93 = vmatprep.subr.mxu0 0.0
  %94 = vmatpush1.msra.mxu0 0.0
  %95 = vmatprep.subr.mxu0 0.0
  %96 = vmatpush1.msra.mxu0 0.0
  %97 = vmatprep.subr.mxu0 0.0
  %98 = vmatpush1.msra.mxu0 0.0
  %99 = vmatprep.subr.mxu0 0.0
  %100 = vmatpush1.msra.mxu0 0.0
  %101 = vmatprep.subr.mxu0 0.0
  %102 = vmatpush1.msra.mxu0 0.0
  %103 = vmatprep.subr.mxu0 0.0
  %104 = vmatpush1.msra.mxu0 0.0
  %105 = vmatprep.subr.mxu0 0.0
  %106 = vmatpush1.msra.mxu0 0.0
  %107 = vmatprep.subr.mxu0 0.0
  %108 = vmatpush1.msra.mxu0 0.0
  %109 = vmatprep.subr.mxu0 0.0
  %110 = vmatpush1.msra.mxu0 0.0
  %111 = vmatprep.subr.mxu0 0.0
  %112 = vmatpush1.msra.mxu0 0.0
  %113 = vmatprep.subr.mxu0 0.0
  %114 = vmatpush1.msra.mxu0 0.0
  %115 = vmatprep.subr.mxu0 0.0
  %116 = vmatpush1.msra.mxu0 0.0
  %117 = vmatprep.subr.mxu0 0.0
  %118 = vmatpush1.msra.mxu0 0.0
  %119 = vmatprep.subr.mxu0 0.0
  %120 = vmatpush1.msra.mxu0 0.0
  %121 = vmatprep.subr.mxu0 0.0
  %122 = vmatpush1.msra.mxu0 0.0
  %123 = vmatprep.mubr.f32.mxu0 0.0
  %124 = vmatmul.mubr.f32.gmra.mrb[0].mxu0 %v53
  %v125 = vpop.f32.mrb[0].mxu0
  %v126 = vadd.f32 %v49, %v125
  %v127 = vpop.f32.mrb[0].mxu0
  %128 = vdwg.mxu0
  %vm129 = vcmp.ge.f32.partialorder %v126, 0.0
  %v130 = vstv %s41
  %v131 = vmul.f32 %v130, %v126
  %v132 = vsel %vm129, %v126, %v131
  %v133 = vld [vmem:[%s5] sm:$0xff]
  %v134 = vld [vmem:[%s5 + $0x8] sm:$0xff]
  %v135 = vld [vmem:[%s5 + $0x10] sm:$0xff]
  %v136 = vld [vmem:[%s5 + $0x18] sm:$0xff]
  %v137 = vld [vmem:[%s6] sm:$0x1]
  %v139 = vlaneseq
  %v140 = vshrl.u32 %v139, 7
  %v141 = vsub.s32 0, %v140
  %v142 = vrot.slane %v137, %v141
  %vm144 = vcmask 261120
  %v146 = vsel %vm144, %v132, 0
  %148 = vmatprep.subr.mxu0 0.0
  %149 = vmatpush1.msra.mxu0 %v133
  %150 = vmatprep.subr.mxu0 0.0
  %151 = vmatpush1.msra.mxu0 %v134
  %152 = vmatprep.subr.mxu0 0.0
  %153 = vmatpush1.msra.mxu0 %v135
  %154 = vmatprep.subr.mxu0 0.0
  %155 = vmatpush1.msra.mxu0 %v136
  %156 = vmatprep.subr.mxu0 0.0
  %157 = vmatpush1.msra.mxu0 0.0
  %158 = vmatprep.subr.mxu0 0.0
  %159 = vmatpush1.msra.mxu0 0.0
  %160 = vmatprep.subr.mxu0 0.0
  %161 = vmatpush1.msra.mxu0 0.0
  %162 = vmatprep.subr.mxu0 0.0
  %163 = vmatpush1.msra.mxu0 0.0
  %164 = vmatprep.subr.mxu0 0.0
  %165 = vmatpush1.msra.mxu0 0.0
  %166 = vmatprep.subr.mxu0 0.0
  %167 = vmatpush1.msra.mxu0 0.0
  %168 = vmatprep.subr.mxu0 0.0
  %169 = vmatpush1.msra.mxu0 0.0
  %170 = vmatprep.subr.mxu0 0.0
  %171 = vmatpush1.msra.mxu0 0.0
  %172 = vmatprep.subr.mxu0 0.0
  %173 = vmatpush1.msra.mxu0 0.0
  %174 = vmatprep.subr.mxu0 0.0
  %175 = vmatpush1.msra.mxu0 0.0
  %176 = vmatprep.subr.mxu0 0.0
  %177 = vmatpush1.msra.mxu0 0.0
  %178 = vmatprep.subr.mxu0 0.0
  %179 = vmatpush1.msra.mxu0 0.0
  %180 = vmatprep.subr.mxu0 0.0
  %181 = vmatpush1.msra.mxu0 0.0
  %182 = vmatprep.subr.mxu0 0.0
  %183 = vmatpush1.msra.mxu0 0.0
  %184 = vmatprep.subr.mxu0 0.0
  %185 = vmatpush1.msra.mxu0 0.0
  %186 = vmatprep.subr.mxu0 0.0
  %187 = vmatpush1.msra.mxu0 0.0
  %188 = vmatprep.subr.mxu0 0.0
  %189 = vmatpush1.msra.mxu0 0.0
  %190 = vmatprep.subr.mxu0 0.0
  %191 = vmatpush1.msra.mxu0 0.0
  %192 = vmatprep.subr.mxu0 0.0
  %193 = vmatpush1.msra.mxu0 0.0
  %194 = vmatprep.subr.mxu0 0.0
  %195 = vmatpush1.msra.mxu0 0.0
  %196 = vmatprep.subr.mxu0 0.0
  %197 = vmatpush1.msra.mxu0 0.0
  %198 = vmatprep.subr.mxu0 0.0
  %199 = vmatpush1.msra.mxu0 0.0
  %200 = vmatprep.subr.mxu0 0.0
  %201 = vmatpush1.msra.mxu0 0.0
  %202 = vmatprep.subr.mxu0 0.0
  %203 = vmatpush1.msra.mxu0 0.0
  %204 = vmatprep.subr.mxu0 0.0
  %205 = vmatpush1.msra.mxu0 0.0
  %206 = vmatprep.subr.mxu0 0.0
  %207 = vmatpush1.msra.mxu0 0.0
  %208 = vmatprep.subr.mxu0 0.0
  %209 = vmatpush1.msra.mxu0 0.0
  %210 = vmatprep.subr.mxu0 0.0
  %211 = vmatpush1.msra.mxu0 0.0
  %212 = vmatprep.mubr.f32.mxu0 0.0
  %213 = vmatmul.mubr.f32.gmra.mrb[0].mxu0 %v146
  %v214 = vpop.f32.mrb[0].mxu0
  %v215 = vadd.f32 %v142, %v214
  %v216 = vpop.f32.mrb[0].mxu0
  %217 = vdwg.mxu0
  %vm218 = vcmp.ge.f32.partialorder %v215, 0.0
  %v219 = vmul.f32 %v130, %v215
  %v220 = vsel %vm218, %v215, %v219
  %v221 = vld [vmem:[%s7] sm:$0xff]
  %v222 = vld [vmem:[%s7 + $0x8] sm:$0xff]
  %v223 = vld [vmem:[%s7 + $0x10] sm:$0xff]
  %v224 = vld [vmem:[%s7 + $0x18] sm:$0xff]
  %v225 = vld [vmem:[%s8] sm:$0x1]
  %v227 = vlaneseq
  %v228 = vshrl.u32 %v227, 7
  %v229 = vsub.s32 0, %v228
  %v230 = vrot.slane %v225, %v229
  %v233 = vsel %vm144, %v220, 0
  %235 = vmatprep.subr.mxu0 0.0
  %236 = vmatpush1.msra.mxu0 %v221
  %237 = vmatprep.subr.mxu0 0.0
  %238 = vmatpush1.msra.mxu0 %v222
  %239 = vmatprep.subr.mxu0 0.0
  %240 = vmatpush1.msra.mxu0 %v223
  %241 = vmatprep.subr.mxu0 0.0
  %242 = vmatpush1.msra.mxu0 %v224
  %243 = vmatprep.subr.mxu0 0.0
  %244 = vmatpush1.msra.mxu0 0.0
  %245 = vmatprep.subr.mxu0 0.0
  %246 = vmatpush1.msra.mxu0 0.0
  %247 = vmatprep.subr.mxu0 0.0
  %248 = vmatpush1.msra.mxu0 0.0
  %249 = vmatprep.subr.mxu0 0.0
  %250 = vmatpush1.msra.mxu0 0.0
  %251 = vmatprep.subr.mxu0 0.0
  %252 = vmatpush1.msra.mxu0 0.0
  %253 = vmatprep.subr.mxu0 0.0
  %254 = vmatpush1.msra.mxu0 0.0
  %255 = vmatprep.subr.mxu0 0.0
  %256 = vmatpush1.msra.mxu0 0.0
  %257 = vmatprep.subr.mxu0 0.0
  %258 = vmatpush1.msra.mxu0 0.0
  %259 = vmatprep.subr.mxu0 0.0
  %260 = vmatpush1.msra.mxu0 0.0
  %261 = vmatprep.subr.mxu0 0.0
  %262 = vmatpush1.msra.mxu0 0.0
  %263 = vmatprep.subr.mxu0 0.0
  %264 = vmatpush1.msra.mxu0 0.0
  %265 = vmatprep.subr.mxu0 0.0
  %266 = vmatpush1.msra.mxu0 0.0
  %267 = vmatprep.subr.mxu0 0.0
  %268 = vmatpush1.msra.mxu0 0.0
  %269 = vmatprep.subr.mxu0 0.0
  %270 = vmatpush1.msra.mxu0 0.0
  %271 = vmatprep.subr.mxu0 0.0
  %272 = vmatpush1.msra.mxu0 0.0
  %273 = vmatprep.subr.mxu0 0.0
  %274 = vmatpush1.msra.mxu0 0.0
  %275 = vmatprep.subr.mxu0 0.0
  %276 = vmatpush1.msra.mxu0 0.0
  %277 = vmatprep.subr.mxu0 0.0
  %278 = vmatpush1.msra.mxu0 0.0
  %279 = vmatprep.subr.mxu0 0.0
  %280 = vmatpush1.msra.mxu0 0.0
  %281 = vmatprep.subr.mxu0 0.0
  %282 = vmatpush1.msra.mxu0 0.0
  %283 = vmatprep.subr.mxu0 0.0
  %284 = vmatpush1.msra.mxu0 0.0
  %285 = vmatprep.subr.mxu0 0.0
  %286 = vmatpush1.msra.mxu0 0.0
  %287 = vmatprep.subr.mxu0 0.0
  %288 = vmatpush1.msra.mxu0 0.0
  %289 = vmatprep.subr.mxu0 0.0
  %290 = vmatpush1.msra.mxu0 0.0
  %291 = vmatprep.subr.mxu0 0.0
  %292 = vmatpush1.msra.mxu0 0.0
  %293 = vmatprep.subr.mxu0 0.0
  %294 = vmatpush1.msra.mxu0 0.0
  %295 = vmatprep.subr.mxu0 0.0
  %296 = vmatpush1.msra.mxu0 0.0
  %297 = vmatprep.subr.mxu0 0.0
  %298 = vmatpush1.msra.mxu0 0.0
  %299 = vmatprep.mubr.f32.mxu0 0.0
  %300 = vmatmul.mubr.f32.gmra.mrb[0].mxu0 %v233
  %v301 = vpop.f32.mrb[0].mxu0
  %v302 = vadd.f32 %v230, %v301
  %v303 = vpop.f32.mrb[0].mxu0
  %304 = vdwg.mxu0
  %v305 = vld [vmem:[%s9] sm:$0xff]
  %v306 = vld [vmem:[%s9 + $0x8] sm:$0xff]
  %v307 = vld [vmem:[%s9 + $0x10] sm:$0xff]
  %v308 = vld [vmem:[%s9 + $0x18] sm:$0xff]
  %v309 = vld [vmem:[%s10] sm:$0x1]
  %v311 = vlaneseq
  %v312 = vshrl.u32 %v311, 7
  %v313 = vsub.s32 0, %v312
  %v314 = vrot.slane %v309, %v313
  %316 = vmatprep.subr.mxu0 0.0
  %317 = vmatpush1.msra.mxu0 %v305
  %318 = vmatprep.subr.mxu0 0.0
  %319 = vmatpush1.msra.mxu0 %v306
  %320 = vmatprep.subr.mxu0 0.0
  %321 = vmatpush1.msra.mxu0 %v307
  %322 = vmatprep.subr.mxu0 0.0
  %323 = vmatpush1.msra.mxu0 %v308
  %324 = vmatprep.subr.mxu0 0.0
  %325 = vmatpush1.msra.mxu0 0.0
  %326 = vmatprep.subr.mxu0 0.0
  %327 = vmatpush1.msra.mxu0 0.0
  %328 = vmatprep.subr.mxu0 0.0
  %329 = vmatpush1.msra.mxu0 0.0
  %330 = vmatprep.subr.mxu0 0.0
  %331 = vmatpush1.msra.mxu0 0.0
  %332 = vmatprep.subr.mxu0 0.0
  %333 = vmatpush1.msra.mxu0 0.0
  %334 = vmatprep.subr.mxu0 0.0
  %335 = vmatpush1.msra.mxu0 0.0
  %336 = vmatprep.subr.mxu0 0.0
  %337 = vmatpush1.msra.mxu0 0.0
  %338 = vmatprep.subr.mxu0 0.0
  %339 = vmatpush1.msra.mxu0 0.0
  %340 = vmatprep.subr.mxu0 0.0
  %341 = vmatpush1.msra.mxu0 0.0
  %342 = vmatprep.subr.mxu0 0.0
  %343 = vmatpush1.msra.mxu0 0.0
  %344 = vmatprep.subr.mxu0 0.0
  %345 = vmatpush1.msra.mxu0 0.0
  %346 = vmatprep.subr.mxu0 0.0
  %347 = vmatpush1.msra.mxu0 0.0
  %348 = vmatprep.subr.mxu0 0.0
  %349 = vmatpush1.msra.mxu0 0.0
  %350 = vmatprep.subr.mxu0 0.0
  %351 = vmatpush1.msra.mxu0 0.0
  %352 = vmatprep.subr.mxu0 0.0
  %353 = vmatpush1.msra.mxu0 0.0
  %354 = vmatprep.subr.mxu0 0.0
  %355 = vmatpush1.msra.mxu0 0.0
  %356 = vmatprep.subr.mxu0 0.0
  %357 = vmatpush1.msra.mxu0 0.0
  %358 = vmatprep.subr.mxu0 0.0
  %359 = vmatpush1.msra.mxu0 0.0
  %360 = vmatprep.subr.mxu0 0.0
  %361 = vmatpush1.msra.mxu0 0.0
  %362 = vmatprep.subr.mxu0 0.0
  %363 = vmatpush1.msra.mxu0 0.0
  %364 = vmatprep.subr.mxu0 0.0
  %365 = vmatpush1.msra.mxu0 0.0
  %366 = vmatprep.subr.mxu0 0.0
  %367 = vmatpush1.msra.mxu0 0.0
  %368 = vmatprep.subr.mxu0 0.0
  %369 = vmatpush1.msra.mxu0 0.0
  %370 = vmatprep.subr.mxu0 0.0
  %371 = vmatpush1.msra.mxu0 0.0
  %372 = vmatprep.subr.mxu0 0.0
  %373 = vmatpush1.msra.mxu0 0.0
  %374 = vmatprep.subr.mxu0 0.0
  %375 = vmatpush1.msra.mxu0 0.0
  %376 = vmatprep.subr.mxu0 0.0
  %377 = vmatpush1.msra.mxu0 0.0
  %378 = vmatprep.subr.mxu0 0.0
  %379 = vmatpush1.msra.mxu0 0.0
  %380 = vmatprep.mubr.f32.mxu0 0.0
  %381 = vmatmul.mubr.f32.gmra.mrb[0].mxu0 %v233
  %v382 = vpop.f32.mrb[0].mxu0
  %v383 = vadd.f32 %v314, %v382
  %v384 = vpop.f32.mrb[0].mxu0
  %385 = vdwg.mxu0
  %vm386 = vcmp.gt.f32.partialorder %v383, 20.0
  %v387 = vmin.f32 %v383, 20.0
  %v388 = vmul.f32 %v387, 1.442695
  %v389 = vpow.pop %v388
  %v390 = vadd.f32 %v389, 1.0
  %v391 = vlog2.pop %v390
  %v392 = vmul.f32 %v391, 0.6931472
  %v393 = vmul.f32 -0.5, %v389
  %v394 = vadd.f32 %v393, 1.0
  %v395 = vmul.f32 %v394, %v389
  %v396 = vand.u32 2147483647, %v389
  %vm397 = vcmp.lt.f32.partialorder %v396, 0.0004427343
  %v398 = vsel %vm397, %v395, %v392
  %v399 = vsel %vm386, %v383, %v398
  %v400 = vadd.f32 %v399, 1e-06
  %v401 = vld [vmem:[%s2] sm:$0xff]
  %v402 = vmul.f32 %v400, %v401
  %v403 = vadd.f32 %v302, %v402
  %v404 = vmul.f32 %v401, -0.5
  %v405 = vmul.f32 %v404, %v401
  %v406 = vlog2.pop %v400
  %v407 = vmul.f32 %v406, 0.6931472
  %v408 = vsub.f32 %v405, %v407
  %v409 = vsub.f32 %v408, 0.9189385
  %v410 = vtanh.pop %v403
  %v411 = vtanh.pop %v410
  %v412 = vmul.f32 %v411, %v411
  %v413 = vsub.f32 1e-07, %v412
  %v414 = vadd.f32 %v413, 1.0
  %v415 = vlog2.pop %v414
  %v416 = vmul.f32 %v415, 0.6931472
  %v417 = vmul.f32 -0.5, %v413
  %v418 = vadd.f32 %v417, 1.0
  %v419 = vmul.f32 %v418, %v413
  %v420 = vand.u32 2147483647, %v413
  %vm421 = vcmp.lt.f32.partialorder %v420, 0.0004427343
  %v422 = vsel %vm421, %v419, %v416
  %v423 = vsub.f32 %v409, %v422
  %vm424 = vcmask 23552
  %425 = vst.msk [vmem:[%s11] sm:$0xff] %vm424, %v410
  %426 = vst.msk [vmem:[%s12] sm:$0xff] %vm424, %v423
  // Predicated region
  $region46: #{tpu_custom_call.1} parent=0 // pred_check
    _
  $region47: #{tpu_custom_call.1} parent=0 // pred_check_branch
    %428 = sbr.rel (0) target = $region49
  $region48: #{tpu_custom_call.1} parent=0 // pred_region
    _
  $region49: #{tpu_custom_call.1} parent=0 // pred_fallthru
    _
  // Predicated region
  $region50: #{tpu_custom_call.1} parent=0 // pred_check
    _
  $region51: #{tpu_custom_call.1} parent=0 // pred_check_branch
    %430 = sbr.rel (0) target = $region53
  $region52: #{tpu_custom_call.1} parent=0 // pred_region
    _
  $region53: #{tpu_custom_call.1} parent=0 // pred_fallthru
    _
  // Predicated region
  $region54: #{tpu_custom_call.1} parent=0 // pred_check
    _
  $region55: #{tpu_custom_call.1} parent=0 // pred_check_branch
    %432 = sbr.rel (0) target = $region57
  $region56: #{tpu_custom_call.1} parent=0 // pred_region
    _
  $region57: #{tpu_custom_call.1} parent=0 // pred_fallthru
    _
  // Predicated region
  $region58: #{tpu_custom_call.1} parent=0 // pred_check
    _
  $region59: #{tpu_custom_call.1} parent=0 // pred_check_branch
    %434 = sbr.rel (0) target = $region61
  $region60: #{tpu_custom_call.1} parent=0 // pred_region
    _
  $region61: #{tpu_custom_call.1} parent=0 // pred_fallthru
    _

</llo_original>
